<compile_context>
chip_gen: v7x
topology: tpu7x:2x2x1
jax: 0.10.0
libtpu: 0.0.40
codegen_flags: <defaults>
</compile_context>

<pallas_src>
import functools

import jax
import jax.numpy as jnp
from jax.experimental import pallas as pl
from jax.experimental.pallas import tpu as pltpu

_MIB = 1024 * 1024


def _round_up(x, m):
    return ((x + m - 1) // m) * m


def _vmem_budget_and_limit():
    """Returns (working-set budget for tile sizing, scoped-VMEM limit) in bytes.

    Defaults are sized for the most constrained generation (v7x: 64 MiB
    physical VMEM per TensorCore -> <=48 MiB scoped limit with headroom).
    Chips reporting >= 96 MiB (v5e / v6e: 128 MiB physical) get roomier tiles
    and a higher limit.
    """
    budget, limit = 16 * _MIB, 48 * _MIB
    try:
        cap = int(getattr(pltpu.get_tpu_info(), "vmem_capacity_bytes", 0) or 0)
    except Exception:
        cap = 0
    if cap >= 96 * _MIB:
        budget, limit = 28 * _MIB, 80 * _MIB
    return budget, limit


def _plan_tile(n, per_row_bytes, budget_bytes, row_align):
    """Pick the batch tile size.

    Multi-tile blocks are `row_align`-aligned.  If the whole batch fits in one
    tile the block simply equals the full array (no alignment constraint);
    when n >= 256 we still split it in two so v7x's second TensorCore gets
    work (a single extra ~0.35 us step on single-TC chips, negligible).
    """
    budget_rows = max(row_align, budget_bytes // max(1, per_row_bytes))
    budget_rows = (budget_rows // row_align) * row_align
    if budget_rows >= n:
        if n >= max(256, 2 * row_align):
            half = (n + 1) // 2
            t = _round_up(half, row_align)
            if t < n:
                return t
        return n
    return budget_rows


def _ib_kernel_lane_dense(logits_ref, target_ref, feat_ref, out_ref, *,
                          n_valid, alpha, epsilon):
    """Small-C path: transpose so rows live on lanes, classes on sublanes."""
    # Upcast per tile (native dtype arrives from HBM), then transpose
    # (T, C) -> (C, T) on the XLU so every per-row quantity below is a
    # lane-dense (1, T) vector rather than a 1/128-occupancy (T, 1) column.
    lt = jnp.transpose(logits_ref[...].astype(jnp.float32))     # (C, T)
    tgt = target_ref[...]                                       # (1, T) int32
    feat = feat_ref[...].astype(jnp.float32)                    # (1, T)
    c, t = lt.shape

    class_ids = jax.lax.broadcasted_iota(jnp.int32, (c, t), 0)
    is_target = class_ids == tgt                                # (C, T)

    # Numerically stable log-sum-exp (class axis = sublane axis).
    m = jnp.max(lt, axis=0, keepdims=True)                      # (1, T)
    sumexp = jnp.sum(jnp.exp(lt - m), axis=0, keepdims=True)    # (1, T)
    lse = m + jnp.log(sumexp)                                   # (1, T)
    logit_t = jnp.sum(jnp.where(is_target, lt, 0.0), axis=0,
                      keepdims=True)                            # (1, T)

    ce = lse - logit_t                                          # per-sample CE
    p_t = jnp.exp(-ce)                                          # softmax[target]
    grads = 2.0 * (1.0 - p_t)        # == sum_c |softmax - onehot|
    ib = alpha / (grads * feat + epsilon)
    term = ce * ib                                              # (1, T)

    # Mask samples past the true batch size (last partial tile).
    col = pl.program_id(0) * t + jax.lax.broadcasted_iota(jnp.int32, (1, t), 1)
    term = jnp.where(col < n_valid, term, 0.0)

    out_ref[...] = jnp.broadcast_to(jnp.sum(term), out_ref.shape)


def _ib_kernel_row_major(logits_ref, target_ref, feat_ref, out_ref, *,
                         n_valid, alpha, epsilon):
    """Large-C path: keep (T, C); the class-axis main pass dominates."""
    logits = logits_ref[...].astype(jnp.float32)                # (T, C)
    tgt = target_ref[...]                                       # (T, 1) int32
    feat = feat_ref[...].astype(jnp.float32)                    # (T, 1)
    t, c = logits.shape

    class_ids = jax.lax.broadcasted_iota(jnp.int32, (t, c), 1)
    is_target = class_ids == tgt

    m = jnp.max(logits, axis=1, keepdims=True)                  # (T, 1)
    sumexp = jnp.sum(jnp.exp(logits - m), axis=1, keepdims=True)
    lse = m + jnp.log(sumexp)
    logit_t = jnp.sum(jnp.where(is_target, logits, 0.0), axis=1,
                      keepdims=True)

    ce = lse - logit_t
    p_t = jnp.exp(-ce)
    grads = 2.0 * (1.0 - p_t)
    ib = alpha / (grads * feat + epsilon)
    term = ce * ib                                              # (T, 1)

    row = pl.program_id(0) * t + jax.lax.broadcasted_iota(jnp.int32, (t, 1), 0)
    term = jnp.where(row < n_valid, term, 0.0)

    out_ref[...] = jnp.broadcast_to(jnp.sum(term), out_ref.shape)


def ib_loss_forward(logits, target, features, *, alpha=10000.0, epsilon=0.001):
    """Pallas implementation of IBLoss.forward (weight=None).

    logits:   (N, C) float (any float dtype; upcast in-kernel)
    target:   (N,)   int class indices
    features: (N,) or (N, 1) float
    returns scalar float32 loss
    """
    n, c = logits.shape
    itemsize = jnp.dtype(logits.dtype).itemsize
    packing = max(8, 32 // max(1, itemsize))   # sublane packing of input dtype
    budget, vmem_limit = _vmem_budget_and_limit()

    lane_dense = c <= 128
    if lane_dense:
        # 2x double-buffered logits + ~6 live (T, C)-sized f32/i32 temps
        # (upcast, transposed copy, iota, exp, select, slack) + the lane-dense
        # (1, T) sidebands / epilogue values (~0.5 KiB per row).
        per_row = 2 * c * itemsize + 6 * c * 4 + 512
        row_align = 128                        # (1, tile_n) lane constraint
        target2 = target.reshape(1, n).astype(jnp.int32)
        feat2 = features.reshape(1, n)
        kernel = functools.partial(_ib_kernel_lane_dense, n_valid=n,
                                   alpha=float(alpha), epsilon=float(epsilon))
        in_specs = lambda tile_n: [
            pl.BlockSpec((tile_n, c), lambda i: (i, 0)),
            pl.BlockSpec((1, tile_n), lambda i: (0, i)),
            pl.BlockSpec((1, tile_n), lambda i: (0, i)),
        ]
    else:
        # Row-major path; (T, 1) columns are lane-padded 128x -> ~6 KiB/row.
        per_row = 2 * c * itemsize + 6 * c * 4 + 6144
        row_align = packing
        target2 = target.reshape(n, 1).astype(jnp.int32)
        feat2 = features.reshape(n, 1)
        kernel = functools.partial(_ib_kernel_row_major, n_valid=n,
                                   alpha=float(alpha), epsilon=float(epsilon))
        in_specs = lambda tile_n: [
            pl.BlockSpec((tile_n, c), lambda i: (i, 0)),
            pl.BlockSpec((tile_n, 1), lambda i: (i, 0)),
            pl.BlockSpec((tile_n, 1), lambda i: (i, 0)),
        ]

    tile_n = _plan_tile(n, per_row, budget, row_align)
    num_tiles = pl.cdiv(n, tile_n)

    # TODO(synk): for extremely large num_classes (where even an 8-row tile's
    # f32 temporaries exceed the VMEM limit) add an 'arbitrary' class-axis
    # grid dimension with running max/sumexp/logit_t scratch (online softmax).
    partials = pl.pallas_call(
        kernel,
        out_shape=jax.ShapeDtypeStruct((num_tiles, 8, 128), jnp.float32),
        grid=(num_tiles,),
        in_specs=in_specs(tile_n),
        out_specs=pl.BlockSpec((1, 8, 128), lambda i: (i, 0, 0)),
        compiler_params=pltpu.CompilerParams(
            dimension_semantics=("parallel",),
            vmem_limit_bytes=vmem_limit),
    )(logits, target2, feat2)

    # Tiny final reduction (num_tiles scalars) in the wrapper.
    return jnp.sum(partials[:, 0, 0]) / jnp.float32(n)


def _reference_ib_loss(logits, target, features, *, alpha=10000.0, epsilon=0.001):
    """Plain-JAX reference for correctness checking."""
    n, c = logits.shape
    onehot = jax.nn.one_hot(target, c, dtype=jnp.float32)
    sm = jax.nn.softmax(logits.astype(jnp.float32), axis=1)
    grads = jnp.sum(jnp.abs(sm - onehot), axis=1)
    ib = grads * features.reshape(-1).astype(jnp.float32)
    ib = alpha / (ib + epsilon)
    logp = jax.nn.log_softmax(logits.astype(jnp.float32), axis=1)
    ce = -jnp.take_along_axis(logp, target[:, None], axis=1)[:, 0]
    return jnp.mean(ce * ib)


if __name__ == "__main__":
    key = jax.random.PRNGKey(0)
    k1, k2, k3 = jax.random.split(key, 3)

    N = 8               # batch
    NUM_CLASSES = 16    # num_classes from IBLoss(num_classes=...)

    logits = jax.random.normal(k1, (N, NUM_CLASSES), dtype=jnp.float32)
    target = jax.random.randint(k2, (N,), 0, NUM_CLASSES, dtype=jnp.int32)
    # features: per-sample feature norm (positive), shape (N, 1) as used in the paper
    features = jnp.abs(jax.random.normal(k3, (N, 1), dtype=jnp.float32)) + 0.1

    loss = ib_loss_forward(logits, target, features, alpha=10000.0, epsilon=0.001)
    loss = jax.block_until_ready(loss)

    ref = _reference_ib_loss(logits, target, features, alpha=10000.0, epsilon=0.001)
    assert jnp.allclose(loss, ref, rtol=1e-5, atol=1e-5), (loss, ref)

    # TODO(synk): optional `weight` tensor for F.cross_entropy not exercised (module default is None).
    print("KERNEL_OK")
</pallas_src>

<mosaic_0001>
module attributes {stable_mosaic.version = 11 : i64} {
  func.func @_ib_kernel_lane_dense(%arg0: i32, %arg1: memref<8x16xf32, #tpu.memory_space<vmem>>, %arg2: memref<1x8xi32, #tpu.memory_space<vmem>>, %arg3: memref<1x8xf32, #tpu.memory_space<vmem>>, %arg4: memref<1x8x128xf32, #tpu.memory_space<vmem>>) attributes {dimension_semantics = [#tpu.dimension_semantics<parallel>], iteration_bounds = array<i64: 1>, scalar_prefetch = 0 : i64, scratch_operands = 0 : i64, tpu.core_type = #tpu.core_type<tc>, window_params = [{transform_indices = @transform_0, window_bounds = array<i64: 8, 16>}, {transform_indices = @transform_1, window_bounds = array<i64: 1, 8>}, {transform_indices = @transform_2, window_bounds = array<i64: 1, 8>}, {transform_indices = @transform_3, window_bounds = array<i64: 1, 8, 128>}]} {
    %c0 = arith.constant 0 : index
    %c0_0 = arith.constant 0 : index
    %0 = vector.load %arg1[%c0, %c0_0] : memref<8x16xf32, #tpu.memory_space<vmem>>, vector<8x16xf32>
    %1 = tpu.transpose %0, [1, 0] : vector<8x16xf32> -> vector<16x8xf32>
    %c0_1 = arith.constant 0 : index
    %c0_2 = arith.constant 0 : index
    %2 = vector.load %arg2[%c0_1, %c0_2] : memref<1x8xi32, #tpu.memory_space<vmem>>, vector<1x8xi32>
    %c0_3 = arith.constant 0 : index
    %c0_4 = arith.constant 0 : index
    %3 = vector.load %arg3[%c0_3, %c0_4] : memref<1x8xf32, #tpu.memory_space<vmem>>, vector<1x8xf32>
    %4 = tpu.iota {dimensions = array<i32: 0>} : vector<16x8xi32>
    %5 = vector.broadcast %2 : vector<1x8xi32> to vector<16x8xi32>
    %6 = arith.cmpi eq, %4, %5 : vector<16x8xi32>
    %cst = arith.constant dense<0xFF800000> : vector<8xf32>
    %7 = vector.multi_reduction <maximumf>, %1, %cst [0] : vector<16x8xf32> to vector<8xf32>
    %8 = vector.shape_cast %7 : vector<8xf32> to vector<1x8xf32>
    %9 = vector.broadcast %8 : vector<1x8xf32> to vector<16x8xf32>
    %10 = arith.subf %1, %9 : vector<16x8xf32>
    %11 = math.exp %10 : vector<16x8xf32>
    %cst_5 = arith.constant dense<0.000000e+00> : vector<8xf32>
    %12 = vector.multi_reduction <add>, %11, %cst_5 [0] : vector<16x8xf32> to vector<8xf32>
    %13 = vector.shape_cast %12 : vector<8xf32> to vector<1x8xf32>
    %14 = math.log %13 : vector<1x8xf32>
    %15 = arith.addf %8, %14 : vector<1x8xf32>
    %cst_6 = arith.constant 0.000000e+00 : f32
    %16 = vector.broadcast %cst_6 : f32 to vector<16x8xf32>
    %17 = arith.select %6, %1, %16 : vector<16x8xi1>, vector<16x8xf32>
    %cst_7 = arith.constant dense<0.000000e+00> : vector<8xf32>
    %18 = vector.multi_reduction <add>, %17, %cst_7 [0] : vector<16x8xf32> to vector<8xf32>
    %19 = vector.shape_cast %18 : vector<8xf32> to vector<1x8xf32>
    %20 = arith.subf %15, %19 : vector<1x8xf32>
    %cst_8 = arith.constant 0.000000e+00 : f32
    %21 = vector.broadcast %cst_8 : f32 to vector<1x8xf32>
    %22 = arith.subf %21, %20 : vector<1x8xf32>
    %23 = math.exp %22 : vector<1x8xf32>
    %cst_9 = arith.constant 1.000000e+00 : f32
    %24 = vector.broadcast %cst_9 : f32 to vector<1x8xf32>
    %25 = arith.subf %24, %23 : vector<1x8xf32>
    %cst_10 = arith.constant 2.000000e+00 : f32
    %26 = vector.broadcast %cst_10 : f32 to vector<1x8xf32>
    %27 = arith.mulf %26, %25 : vector<1x8xf32>
    %28 = arith.mulf %27, %3 : vector<1x8xf32>
    %cst_11 = arith.constant 1.000000e-03 : f32
    %29 = vector.broadcast %cst_11 : f32 to vector<1x8xf32>
    %30 = arith.addf %28, %29 : vector<1x8xf32>
    %cst_12 = arith.constant 1.000000e+04 : f32
    %31 = vector.broadcast %cst_12 : f32 to vector<1x8xf32>
    %32 = arith.divf %31, %30 : vector<1x8xf32>
    %33 = arith.mulf %20, %32 : vector<1x8xf32>
    %c8_i32 = arith.constant 8 : i32
    %34 = arith.muli %arg0, %c8_i32 : i32
    %35 = tpu.iota {dimensions = array<i32: 1>} : vector<1x8xi32>
    %36 = vector.broadcast %34 : i32 to vector<1x8xi32>
    %37 = arith.addi %36, %35 : vector<1x8xi32>
    %c8_i32_13 = arith.constant 8 : i32
    %38 = vector.broadcast %c8_i32_13 : i32 to vector<1x8xi32>
    %39 = arith.cmpi slt, %37, %38 : vector<1x8xi32>
    %cst_14 = arith.constant 0.000000e+00 : f32
    %40 = vector.broadcast %cst_14 : f32 to vector<1x8xf32>
    %41 = arith.select %39, %33, %40 : vector<1x8xi1>, vector<1x8xf32>
    %42 = vector.shape_cast %41 : vector<1x8xf32> to vector<1x1x8xf32>
    %cst_15 = arith.constant dense<0.000000e+00> : vector<1xf32>
    %43 = vector.multi_reduction <add>, %42, %cst_15 [1, 2] : vector<1x1x8xf32> to vector<1xf32>
    %44 = vector.shape_cast %43 : vector<1xf32> to vector<1x1x1xf32>
    %45 = vector.extract %44[0, 0, 0] : f32 from vector<1x1x1xf32>
    %46 = vector.broadcast %45 : f32 to vector<1x8x128xf32>
    %c0_16 = arith.constant 0 : index
    %c0_17 = arith.constant 0 : index
    %c0_18 = arith.constant 0 : index
    %47 = vector.load %arg4[%c0_16, %c0_17, %c0_18] : memref<1x8x128xf32, #tpu.memory_space<vmem>>, vector<1x8x128xf32>
    tpu.vector_store %arg4[%c0_16, %c0_17, %c0_18], %46 {strides = array<i32>} : memref<1x8x128xf32, #tpu.memory_space<vmem>>, vector<1x8x128xf32>,
    return
  }
  func.func @transform_0(%arg0: i32) -> (i32, i32) {
    %c0_i32 = arith.constant 0 : i32
    %c0_i32_0 = arith.constant 0 : i32
    return %arg0, %c0_i32 : i32, i32
  }
  func.func @transform_1(%arg0: i32) -> (i32, i32) {
    %c0_i32 = arith.constant 0 : i32
    %c0_i32_0 = arith.constant 0 : i32
    return %c0_i32, %arg0 : i32, i32
  }
  func.func @transform_2(%arg0: i32) -> (i32, i32) {
    %c0_i32 = arith.constant 0 : i32
    %c0_i32_0 = arith.constant 0 : i32
    return %c0_i32, %arg0 : i32, i32
  }
  func.func @transform_3(%arg0: i32) -> (i32, i32, i32) {
    %c0_i32 = arith.constant 0 : i32
    %c0_i32_0 = arith.constant 0 : i32
    %c0_i32_1 = arith.constant 0 : i32
    return %arg0, %c0_i32, %c0_i32_0 : i32, i32, i32
  }
}

</mosaic_0001>

<llo_original>
// kernel: tpu_custom_call.1
$region0: #{tpu_custom_call.1}
  #allocation0 [shape = 'u32[]', space=smem, size = 0x4, offset = 0x4, fixed_abs, tag = 'smem constant byte address 0x4 - core index']
  #allocation1 [shape = 'u32[144,128]{1,0:T(1,128)}', space=vmem, size = 0x12000, scoped, tag = 'internal scratch']
  %s0 = inlined_call_operand.hbm [shape: f32[8,16], index: 0, kind: input, shape index: {}]
  %s1 = inlined_call_operand.vmem [shape: s32[1,8], index: 1, kind: input, shape index: {}]
  %s2 = inlined_call_operand.vmem [shape: f32[1,8], index: 2, kind: input, shape index: {}]
  %s3 = inlined_call_operand.hbm [shape: f32[1,8,128], index: 3, kind: output, shape index: {}]
  %s4 = sld [smem:[#allocation0]]
  $region26: #{tpu_custom_call.1} parent=0
    _
  %s6 = ssub.s32 1, %s4
  %s7 = scalar_select 0, %s6, %s4
  $region1: #{tpu_custom_call.1} parent=0
    #allocation2 [shape = 'u8[4096]{0}', space=vmem, size = 0x1000, scoped, tag = 'input window, operand 0, single buffered']
    #allocation3 [shape = 's32[1]{0}', space=sflag, size = 0x4, scoped, tag = 'scoped memory for tpu_custom_call.1']
    #allocation4 [shape = 's32[1]{0}', space=sflag, size = 0x4, scoped, tag = 'scoped memory for tpu_custom_call.1']
    #allocation5 [shape = 'u8[4096]{0}', space=vmem, size = 0x1000, scoped, tag = 'output window, operand 0, single buffered']
    %8 = vsyncpa [#allocation3], 0
    %9 = vsyncpa [#allocation4], 0
    // Predicated region
    $region2: #{tpu_custom_call.1} parent=1 // pred_check
      _
    $region3: #{tpu_custom_call.1} parent=1 // pred_check_branch
      %11 = sbr.rel (0) target = $region5
    $region4: #{tpu_custom_call.1} parent=1 // pred_region
      %s13 = ssub.s32 128, 128
      %14 = vsyncadd [#allocation3], %s13
      %s16 = sshll.u32 [#allocation2], 4
      %s17 = int_to_ptr.vmem [resolvable:$true] %s16
      %19 = dma.hbm_to_vmem [thread:$0]  %s0, 128, %s17, [#allocation3]
    $region5: #{tpu_custom_call.1} parent=1 // pred_fallthru
      _
    // Predicated region
    $region6: #{tpu_custom_call.1} parent=1 // pred_check
      _
    $region7: #{tpu_custom_call.1} parent=1 // pred_check_branch
      %21 = sbr.rel (0) target = $region9
    $region8: #{tpu_custom_call.1} parent=1 // pred_region
      _
    $region9: #{tpu_custom_call.1} parent=1 // pred_fallthru
      _
    // Predicated region
    $region10: #{tpu_custom_call.1} parent=1 // pred_check
      _
    $region11: #{tpu_custom_call.1} parent=1 // pred_check_branch
      %23 = sbr.rel (0) target = $region13
    $region12: #{tpu_custom_call.1} parent=1 // pred_region
      _
    $region13: #{tpu_custom_call.1} parent=1 // pred_fallthru
      _
    // Predicated region
    $region14: #{tpu_custom_call.1} parent=1 // pred_check
      _
    $region15: #{tpu_custom_call.1} parent=1 // pred_check_branch
      %25 = sbr.rel (0) target = $region17
    $region16: #{tpu_custom_call.1} parent=1 // pred_region
      %26 = dma.done [#allocation3], 128
    $region17: #{tpu_custom_call.1} parent=1 // pred_fallthru
      _
    %v27 = vld [vmem:[#allocation2] sm:$0xff]
    %28 = vxpose.xlu0.b32.start [1/16] %v27, 128
    %29 = vxpose.xlu0.b32.cont [2/16] 0.0, 128
    %30 = vxpose.xlu0.b32.cont [3/16] 0.0, 128
    %31 = vxpose.xlu0.b32.cont [4/16] 0.0, 128
    %32 = vxpose.xlu0.b32.cont [5/16] 0.0, 128
    %33 = vxpose.xlu0.b32.cont [6/16] 0.0, 128
    %34 = vxpose.xlu0.b32.cont [7/16] 0.0, 128
    %35 = vxpose.xlu0.b32.cont [8/16] 0.0, 128
    %36 = vxpose.xlu0.b32.cont [9/16] 0.0, 128
    %37 = vxpose.xlu0.b32.cont [10/16] 0.0, 128
    %38 = vxpose.xlu0.b32.cont [11/16] 0.0, 128
    %39 = vxpose.xlu0.b32.cont [12/16] 0.0, 128
    %40 = vxpose.xlu0.b32.cont [13/16] 0.0, 128
    %41 = vxpose.xlu0.b32.cont [14/16] 0.0, 128
    %42 = vxpose.xlu0.b32.cont [15/16] 0.0, 128
    %43 = vxpose.xlu0.b32.end [16/16] 0.0, 128
    %v44 = vpop.trf.xlu0
    %v45 = vpop.trf.xlu0
    %v46 = vpop.trf.xlu0
    %v47 = vpop.trf.xlu0
    %v48 = vpop.trf.xlu0
    %v49 = vpop.trf.xlu0
    %v50 = vpop.trf.xlu0
    %v51 = vpop.trf.xlu0
    %v52 = vpop.trf.xlu0
    %v53 = vpop.trf.xlu0
    %v54 = vpop.trf.xlu0
    %v55 = vpop.trf.xlu0
    %v56 = vpop.trf.xlu0
    %v57 = vpop.trf.xlu0
    %v58 = vpop.trf.xlu0
    %v59 = vpop.trf.xlu0
    %v60 = vld [vmem:[%s1] sm:$0x1]
    %v61 = vld [vmem:[%s2] sm:$0x1]
    %v62 = vlaneseq
    %v63 = vshrl.u32 %v62, 7
    %v64 = vadd.s32 %v63, 8
    %v65 = vlaneseq
    %v66 = vshrl.u32 %v65, 7
    %v67 = vsub.s32 0, %v66
    %v68 = vrot.slane %v60, %v67
    %vm69 = vcmp.eq.s32.totalorder %v63, %v68
    %vm70 = vcmp.eq.s32.totalorder %v64, %v68
    %vm71 = vcmask 64512
    %v72 = vsel %vm71, %v44, -inf
    %v73 = vsel %vm71, %v45, -inf
    %v74 = vmax.f32 %v72, %v73
    %v75 = vrot.slane %v74, 4
    %v76 = vmax.f32 %v74, %v75
    %v77 = vrot.slane %v76, 2
    %v78 = vmax.f32 %v76, %v77
    %v79 = vrot.slane %v78, 1
    %v80 = vmax.f32 %v78, %v79
    %v81 = vsub.f32 %v44, %v80
    %v82 = vsub.f32 %v45, %v80
    %v83 = vmul.f32 %v81, 1.442695
    %v84 = vpow.pop %v83
    %v85 = vmul.f32 %v82, 1.442695
    %v86 = vpow.pop %v85
    %v87 = vsel %vm71, %v84, 0.0
    %v88 = vsel %vm71, %v86, 0.0
    %v89 = vadd.f32 %v87, %v88
    %v90 = vrot.slane %v89, 4
    %v91 = vadd.f32 %v89, %v90
    %v92 = vrot.slane %v91, 2
    %v93 = vadd.f32 %v91, %v92
    %v94 = vrot.slane %v93, 1
    %v95 = vadd.f32 %v93, %v94
    %v96 = vlog2.pop %v95
    %v97 = vmul.f32 %v96, 0.6931472
    %v98 = vadd.f32 %v80, %v97
    %v99 = vsel %vm69, %v44, 0.0
    %v100 = vsel %vm70, %v45, 0.0
    %v101 = vsel %vm71, %v99, 0.0
    %v102 = vsel %vm71, %v100, 0.0
    %v103 = vadd.f32 %v101, %v102
    %v104 = vrot.slane %v103, 4
    %v105 = vadd.f32 %v103, %v104
    %v106 = vrot.slane %v105, 2
    %v107 = vadd.f32 %v105, %v106
    %v108 = vrot.slane %v107, 1
    %v109 = vadd.f32 %v107, %v108
    %v110 = vsub.f32 %v98, %v109
    %v111 = vsub.f32 0.0, %v110
    %v112 = vmul.f32 %v111, 1.442695
    %v113 = vpow.pop %v112
    %v114 = vsub.f32 1.0, %v113
    %v115 = vmul.f32 %v114, 2.0
    %v116 = vmul.f32 %v115, %v61
    %v117 = vadd.f32 %v116, 0.001
    %v118 = vrcp.pop %v117
    %v119 = vmul.f32 10000.0, %v118
    %v120 = vmul.f32 %v110, %v119
    %s121 = smul.u32 0, 8
    %v122 = vlaneseq
    %v123 = vand.u32 %v122, 127
    %v124 = vstv %s121
    %v125 = vadd.s32 %v124, %v123
    %vm126 = vcmp.lt.s32.totalorder %v125, 8
    %v127 = vsel %vm126, %v120, 0.0
    %vm128 = vcmask 57344
    %v129 = vsel %vm128, %v127, 0.0
    %130 = vadd.xlane.f32.xlu0 %v129
    %v131 = vpop.xlane.xlu0 %130
    %v132 = vrot.slane %v131, 4
    %v133 = vadd.f32 %v131, %v132
    %v134 = vrot.slane %v133, 2
    %v135 = vadd.f32 %v133, %v134
    %v136 = vrot.slane %v135, 1
    %v137 = vadd.f32 %v135, %v136
    %s138 = vtos %v137
    %v139 = vstv %s138
    %140 = vst [vmem:[#allocation5] sm:$0xff] %v139
    // Predicated region
    $region18: #{tpu_custom_call.1} parent=1 // pred_check
      _
    $region19: #{tpu_custom_call.1} parent=1 // pred_check_branch
      %142 = sbr.rel (0) target = $region21
    $region20: #{tpu_custom_call.1} parent=1 // pred_region
      %s144 = ssub.s32 128, 128
      %145 = vsyncadd [#allocation4], %s144
      %s147 = sshll.u32 [#allocation5], 4
      %s148 = int_to_ptr.vmem [resolvable:$true] %s147
      %150 = dma.vmem_to_hbm [thread:$0]  %s148, 128, %s3, [#allocation4]
    $region21: #{tpu_custom_call.1} parent=1 // pred_fallthru
      _
    // Predicated region
    $region22: #{tpu_custom_call.1} parent=1 // pred_check
      _
    $region23: #{tpu_custom_call.1} parent=1 // pred_check_branch
      %152 = sbr.rel (0) target = $region25
    $region24: #{tpu_custom_call.1} parent=1 // pred_region
      %153 = dma.done [#allocation4], 128
    $region25: #{tpu_custom_call.1} parent=1 // pred_fallthru
      _
    %154 = vsyncpa [#allocation3], 1
    %155 = vsyncpa [#allocation4], 1

</llo_original>
